<compile_context>
chip_gen: v6e
topology: v6e:2x2x1
jax: 0.10.0
libtpu: 0.0.40
codegen_flags: <defaults>
</compile_context>

<pallas_src>
import jax
import jax.numpy as jnp
from jax.experimental import pallas as pl
from jax.experimental.pallas import tpu as pltpu


def _kernel(x1_ref, x2_ref, n1_ref, n2_ref,
            w11_ref, b11_ref, w12_ref, b12_ref,   # MLP1: (C,H),(1,H),(H,C),(1,C)
            w21_ref, b21_ref, w22_ref, b22_ref,   # MLP2: (C,H),(1,H),(H,C),(1,C)
            out_ref):
    x1 = x1_ref[...]                      # (TB, C) f32 — kept f32 for the selection
    x2 = x2_ref[...]
    cdt = w11_ref.dtype                   # matmul operand dtype (f32 or bf16)

    # MLP1(x1): Linear -> ReLU -> Linear (MXU, f32 accumulation, f32 bias add)
    h1 = jnp.dot(x1.astype(cdt), w11_ref[...],
                 preferred_element_type=jnp.float32) + b11_ref[...]
    h1 = jnp.maximum(h1, 0.0)
    f1 = jnp.dot(h1.astype(cdt), w12_ref[...],
                 preferred_element_type=jnp.float32) + b12_ref[...]

    # MLP2(x2)
    h2 = jnp.dot(x2.astype(cdt), w21_ref[...],
                 preferred_element_type=jnp.float32) + b21_ref[...]
    h2 = jnp.maximum(h2, 0.0)
    f2 = jnp.dot(h2.astype(cdt), w22_ref[...],
                 preferred_element_type=jnp.float32) + b22_ref[...]

    # Hard Gumbel-softmax forward over the 2-way axis: argmax of perturbed
    # logits.  1/tau scaling dropped (monotone for tau > 0); >= matches
    # torch argmax first-index tie-breaking.
    out_ref[...] = jnp.where(f1 + n1_ref[...] >= f2 + n2_ref[...], x1, x2)


def complementary_learning_forward(x1, x2, params, gumbel_noise, tau=1.0,
                                   batch_tile=256,
                                   compute_dtype=jnp.float32):
    """x1, x2: (B, C) f32.  params: dict of (in, out) Linear weights + (1, out)
    biases.  gumbel_noise: pair of (B, C) Gumbel(0,1) samples.  `compute_dtype`
    is the matmul operand dtype (jnp.bfloat16 recommended for production)."""
    assert tau > 0.0, "tau must be positive"
    B, C = x1.shape
    H = params["w11"].shape[1]
    n1, n2 = gumbel_noise

    # Batch tile: keep it a multiple of 8 sublanes when possible; last block
    # may be padded by Pallas (harmless — padded rows are never stored).
    TB = min(int(batch_tile), B)
    grid = (pl.cdiv(B, TB),)

    # Matmul operands in compute_dtype; biases stay f32 (added post-accumulation).
    cdt = jnp.dtype(compute_dtype)
    w11 = params["w11"].astype(cdt)
    w12 = params["w12"].astype(cdt)
    w21 = params["w21"].astype(cdt)
    w22 = params["w22"].astype(cdt)
    b11, b12 = params["b11"], params["b12"]
    b21, b22 = params["b21"], params["b22"]

    # Streaming (B, C) arrays: blocked over batch, default double-buffering.
    def stream():
        return pl.BlockSpec((TB, C), lambda i: (i, 0))

    # Weights/biases: constant block index -> fetched once, VMEM-resident;
    # single-buffered to avoid paying 2x VMEM for data that never changes.
    def resident(shape):
        return pl.BlockSpec(shape, lambda i: (0, 0),
                            pipeline_mode=pl.Buffered(1))

    in_specs = [
        stream(), stream(), stream(), stream(),          # x1, x2, n1, n2
        resident((C, H)), resident((1, H)), resident((H, C)), resident((1, C)),
        resident((C, H)), resident((1, H)), resident((H, C)), resident((1, C)),
    ]

    # Advisory cost estimate: 4 matmuls of (B,C)@(C,H) / (B,H)@(H,C).
    flops = 8 * B * C * H
    bytes_weights = 2 * (C * H + H * C) * cdt.itemsize + 2 * (H + C) * 4
    bytes_streams = 5 * B * C * 4                         # x1, x2, n1, n2, out
    cost = pl.CostEstimate(flops=flops, transcendentals=0,
                           bytes_accessed=bytes_weights + bytes_streams)

    return pl.pallas_call(
        _kernel,
        out_shape=jax.ShapeDtypeStruct((B, C), x1.dtype),
        grid=grid,
        in_specs=in_specs,
        out_specs=stream(),
        compiler_params=pltpu.CompilerParams(
            dimension_semantics=("parallel",)),   # v7x: 2 TCs split batch tiles
        cost_estimate=cost,
    )(x1, x2, n1, n2,
      w11, b11, w12, b12,
      w21, b21, w22, b22)


def init_params(key, in_channel, hidden):
    """Deterministic synthetic parameters (Linear weights stored as (in, out))."""
    ks = jax.random.split(key, 8)
    s1 = 1.0 / jnp.sqrt(in_channel)
    s2 = 1.0 / jnp.sqrt(hidden)
    return {
        "w11": jax.random.uniform(ks[0], (in_channel, hidden), jnp.float32, -s1, s1),
        "b11": jax.random.uniform(ks[1], (1, hidden), jnp.float32, -s1, s1),
        "w12": jax.random.uniform(ks[2], (hidden, in_channel), jnp.float32, -s2, s2),
        "b12": jax.random.uniform(ks[3], (1, in_channel), jnp.float32, -s2, s2),
        "w21": jax.random.uniform(ks[4], (in_channel, hidden), jnp.float32, -s1, s1),
        "b21": jax.random.uniform(ks[5], (1, hidden), jnp.float32, -s1, s1),
        "w22": jax.random.uniform(ks[6], (hidden, in_channel), jnp.float32, -s2, s2),
        "b22": jax.random.uniform(ks[7], (1, in_channel), jnp.float32, -s2, s2),
    }


if __name__ == "__main__":
    # Small shapes consistent with the module (module default in_channel=512,
    # hidden=2*in_channel).  B=16 with TB=8 exercises the batch-tiled grid.
    B, C = 16, 32
    H = 2 * C
    TB = 8
    tau = 1.0
    # NOTE: C=32 is a toy size; at the module default C=512 the output is
    # already lane-dense (multiple of 128), so no wrapper-side padding is done.

    key = jax.random.PRNGKey(0)
    k_x1, k_x2, k_p, k_g1, k_g2 = jax.random.split(key, 5)

    x1 = jax.random.normal(k_x1, (B, C), jnp.float32)
    x2 = jax.random.normal(k_x2, (B, C), jnp.float32)
    params = init_params(k_p, C, H)

    # Gumbel(0,1) noise sampled in the wrapper (F.gumbel_softmax samples this
    # internally).  Kept as an HBM stream for bit-exact parity with the
    # reference; an in-kernel pltpu.prng_random_bits variant would remove two
    # (B, C) streams but is only distributionally equivalent.
    eps = 1e-10
    u1 = jax.random.uniform(k_g1, (B, C), jnp.float32, minval=eps, maxval=1.0)
    u2 = jax.random.uniform(k_g2, (B, C), jnp.float32, minval=eps, maxval=1.0)
    g1 = -jnp.log(-jnp.log(u1))
    g2 = -jnp.log(-jnp.log(u2))

    # f32 matmuls -> bit-exact comparable against the pure-JAX reference.
    out = complementary_learning_forward(x1, x2, params, (g1, g2), tau=tau,
                                         batch_tile=TB,
                                         compute_dtype=jnp.float32)
    out = jax.block_until_ready(out)

    # Pure-JAX reference of the forward semantics.
    f1 = jnp.maximum(x1 @ params["w11"] + params["b11"], 0.0) @ params["w12"] + params["b12"]
    f2 = jnp.maximum(x2 @ params["w21"] + params["b21"], 0.0) @ params["w22"] + params["b22"]
    d_ref = (f1 + g1) - (f2 + g2)
    ref = jnp.where(d_ref >= 0.0, x1, x2)
    # Hard selection is binary: require exact agreement except where the
    # perturbed logits are a near-tie (rounding-order differences may flip it).
    exact = out == ref
    near_tie = jnp.abs(d_ref) < 1e-4
    assert bool(jnp.all(exact | near_tie)), "mismatch vs reference"

    # bf16 matmul path (production setting) — smoke test: runs and is finite.
    out_bf16 = complementary_learning_forward(x1, x2, params, (g1, g2), tau=tau,
                                              batch_tile=TB,
                                              compute_dtype=jnp.bfloat16)
    out_bf16 = jax.block_until_ready(out_bf16)
    assert bool(jnp.all(jnp.isfinite(out_bf16)))

    print("KERNEL_OK")
</pallas_src>

<mosaic_0001>
module attributes {stable_mosaic.version = 11 : i64} {
  func.func @_kernel(%arg0: i32, %arg1: memref<8x32xf32, #tpu.memory_space<vmem>>, %arg2: memref<8x32xf32, #tpu.memory_space<vmem>>, %arg3: memref<8x32xf32, #tpu.memory_space<vmem>>, %arg4: memref<8x32xf32, #tpu.memory_space<vmem>>, %arg5: memref<32x64xf32, #tpu.memory_space<vmem>>, %arg6: memref<1x64xf32, #tpu.memory_space<vmem>>, %arg7: memref<64x32xf32, #tpu.memory_space<vmem>>, %arg8: memref<1x32xf32, #tpu.memory_space<vmem>>, %arg9: memref<32x64xf32, #tpu.memory_space<vmem>>, %arg10: memref<1x64xf32, #tpu.memory_space<vmem>>, %arg11: memref<64x32xf32, #tpu.memory_space<vmem>>, %arg12: memref<1x32xf32, #tpu.memory_space<vmem>>, %arg13: memref<8x32xf32, #tpu.memory_space<vmem>>) attributes {dimension_semantics = [#tpu.dimension_semantics<parallel>], iteration_bounds = array<i64: 2>, scalar_prefetch = 0 : i64, scratch_operands = 0 : i64, tpu.core_type = #tpu.core_type<tc>, window_params = [{transform_indices = @transform_0, window_bounds = array<i64: 8, 32>}, {transform_indices = @transform_1, window_bounds = array<i64: 8, 32>}, {transform_indices = @transform_2, window_bounds = array<i64: 8, 32>}, {transform_indices = @transform_3, window_bounds = array<i64: 8, 32>}, {pipeline_mode = #tpu.pipeline_mode<synchronous>, transform_indices = @transform_4, window_bounds = array<i64: 32, 64>}, {pipeline_mode = #tpu.pipeline_mode<synchronous>, transform_indices = @transform_5, window_bounds = array<i64: 1, 64>}, {pipeline_mode = #tpu.pipeline_mode<synchronous>, transform_indices = @transform_6, window_bounds = array<i64: 64, 32>}, {pipeline_mode = #tpu.pipeline_mode<synchronous>, transform_indices = @transform_7, window_bounds = array<i64: 1, 32>}, {pipeline_mode = #tpu.pipeline_mode<synchronous>, transform_indices = @transform_8, window_bounds = array<i64: 32, 64>}, {pipeline_mode = #tpu.pipeline_mode<synchronous>, transform_indices = @transform_9, window_bounds = array<i64: 1, 64>}, {pipeline_mode = #tpu.pipeline_mode<synchronous>, transform_indices = @transform_10, window_bounds = array<i64: 64, 32>}, {pipeline_mode = #tpu.pipeline_mode<synchronous>, transform_indices = @transform_11, window_bounds = array<i64: 1, 32>}, {transform_indices = @transform_12, window_bounds = array<i64: 8, 32>}]} {
    %c0 = arith.constant 0 : index
    %c0_0 = arith.constant 0 : index
    %0 = vector.load %arg1[%c0, %c0_0] : memref<8x32xf32, #tpu.memory_space<vmem>>, vector<8x32xf32>
    %c0_1 = arith.constant 0 : index
    %c0_2 = arith.constant 0 : index
    %1 = vector.load %arg2[%c0_1, %c0_2] : memref<8x32xf32, #tpu.memory_space<vmem>>, vector<8x32xf32>
    %c0_3 = arith.constant 0 : index
    %c0_4 = arith.constant 0 : index
    %2 = vector.load %arg5[%c0_3, %c0_4] : memref<32x64xf32, #tpu.memory_space<vmem>>, vector<32x64xf32>
    %cst = arith.constant dense<0.000000e+00> : vector<8x64xf32>
    %3 = tpu.matmul %0, %2, %cst {dimension_numbers = #tpu.dot_dimension_numbers<[1], [0], [0], [1], [0, 0, 1, 1], [], []>} : vector<8x32xf32>, vector<32x64xf32>, vector<8x64xf32> -> vector<8x64xf32>
    %c0_5 = arith.constant 0 : index
    %c0_6 = arith.constant 0 : index
    %4 = vector.load %arg6[%c0_5, %c0_6] : memref<1x64xf32, #tpu.memory_space<vmem>>, vector<1x64xf32>
    %5 = vector.broadcast %4 : vector<1x64xf32> to vector<8x64xf32>
    %6 = arith.addf %3, %5 : vector<8x64xf32>
    %cst_7 = arith.constant 0.000000e+00 : f32
    %7 = vector.broadcast %cst_7 : f32 to vector<8x64xf32>
    %8 = arith.maximumf %6, %7 : vector<8x64xf32>
    %c0_8 = arith.constant 0 : index
    %c0_9 = arith.constant 0 : index
    %9 = vector.load %arg7[%c0_8, %c0_9] : memref<64x32xf32, #tpu.memory_space<vmem>>, vector<64x32xf32>
    %cst_10 = arith.constant dense<0.000000e+00> : vector<8x32xf32>
    %10 = tpu.matmul %8, %9, %cst_10 {dimension_numbers = #tpu.dot_dimension_numbers<[1], [0], [0], [1], [0, 0, 1, 1], [], []>} : vector<8x64xf32>, vector<64x32xf32>, vector<8x32xf32> -> vector<8x32xf32>
    %c0_11 = arith.constant 0 : index
    %c0_12 = arith.constant 0 : index
    %11 = vector.load %arg8[%c0_11, %c0_12] : memref<1x32xf32, #tpu.memory_space<vmem>>, vector<1x32xf32>
    %12 = vector.broadcast %11 : vector<1x32xf32> to vector<8x32xf32>
    %13 = arith.addf %10, %12 : vector<8x32xf32>
    %c0_13 = arith.constant 0 : index
    %c0_14 = arith.constant 0 : index
    %14 = vector.load %arg9[%c0_13, %c0_14] : memref<32x64xf32, #tpu.memory_space<vmem>>, vector<32x64xf32>
    %cst_15 = arith.constant dense<0.000000e+00> : vector<8x64xf32>
    %15 = tpu.matmul %1, %14, %cst_15 {dimension_numbers = #tpu.dot_dimension_numbers<[1], [0], [0], [1], [0, 0, 1, 1], [], []>} : vector<8x32xf32>, vector<32x64xf32>, vector<8x64xf32> -> vector<8x64xf32>
    %c0_16 = arith.constant 0 : index
    %c0_17 = arith.constant 0 : index
    %16 = vector.load %arg10[%c0_16, %c0_17] : memref<1x64xf32, #tpu.memory_space<vmem>>, vector<1x64xf32>
    %17 = vector.broadcast %16 : vector<1x64xf32> to vector<8x64xf32>
    %18 = arith.addf %15, %17 : vector<8x64xf32>
    %cst_18 = arith.constant 0.000000e+00 : f32
    %19 = vector.broadcast %cst_18 : f32 to vector<8x64xf32>
    %20 = arith.maximumf %18, %19 : vector<8x64xf32>
    %c0_19 = arith.constant 0 : index
    %c0_20 = arith.constant 0 : index
    %21 = vector.load %arg11[%c0_19, %c0_20] : memref<64x32xf32, #tpu.memory_space<vmem>>, vector<64x32xf32>
    %cst_21 = arith.constant dense<0.000000e+00> : vector<8x32xf32>
    %22 = tpu.matmul %20, %21, %cst_21 {dimension_numbers = #tpu.dot_dimension_numbers<[1], [0], [0], [1], [0, 0, 1, 1], [], []>} : vector<8x64xf32>, vector<64x32xf32>, vector<8x32xf32> -> vector<8x32xf32>
    %c0_22 = arith.constant 0 : index
    %c0_23 = arith.constant 0 : index
    %23 = vector.load %arg12[%c0_22, %c0_23] : memref<1x32xf32, #tpu.memory_space<vmem>>, vector<1x32xf32>
    %24 = vector.broadcast %23 : vector<1x32xf32> to vector<8x32xf32>
    %25 = arith.addf %22, %24 : vector<8x32xf32>
    %c0_24 = arith.constant 0 : index
    %c0_25 = arith.constant 0 : index
    %26 = vector.load %arg3[%c0_24, %c0_25] : memref<8x32xf32, #tpu.memory_space<vmem>>, vector<8x32xf32>
    %27 = arith.addf %13, %26 : vector<8x32xf32>
    %c0_26 = arith.constant 0 : index
    %c0_27 = arith.constant 0 : index
    %28 = vector.load %arg4[%c0_26, %c0_27] : memref<8x32xf32, #tpu.memory_space<vmem>>, vector<8x32xf32>
    %29 = arith.addf %25, %28 : vector<8x32xf32>
    %30 = arith.cmpf oge, %27, %29 : vector<8x32xf32>
    %31 = arith.select %30, %0, %1 : vector<8x32xi1>, vector<8x32xf32>
    %c0_28 = arith.constant 0 : index
    %c0_29 = arith.constant 0 : index
    %32 = vector.load %arg13[%c0_28, %c0_29] : memref<8x32xf32, #tpu.memory_space<vmem>>, vector<8x32xf32>
    tpu.vector_store %arg13[%c0_28, %c0_29], %31 {strides = array<i32>} : memref<8x32xf32, #tpu.memory_space<vmem>>, vector<8x32xf32>,
    return
  }
  func.func @transform_0(%arg0: i32) -> (i32, i32) {
    %c0_i32 = arith.constant 0 : i32
    %c0_i32_0 = arith.constant 0 : i32
    return %arg0, %c0_i32 : i32, i32
  }
  func.func @transform_1(%arg0: i32) -> (i32, i32) {
    %c0_i32 = arith.constant 0 : i32
    %c0_i32_0 = arith.constant 0 : i32
    return %arg0, %c0_i32 : i32, i32
  }
  func.func @transform_2(%arg0: i32) -> (i32, i32) {
    %c0_i32 = arith.constant 0 : i32
    %c0_i32_0 = arith.constant 0 : i32
    return %arg0, %c0_i32 : i32, i32
  }
  func.func @transform_3(%arg0: i32) -> (i32, i32) {
    %c0_i32 = arith.constant 0 : i32
    %c0_i32_0 = arith.constant 0 : i32
    return %arg0, %c0_i32 : i32, i32
  }
  func.func @transform_4(%arg0: i32) -> (i32, i32) {
    %c0_i32 = arith.constant 0 : i32
    %c0_i32_0 = arith.constant 0 : i32
    %c0_i32_1 = arith.constant 0 : i32
    return %c0_i32, %c0_i32_0 : i32, i32
  }
  func.func @transform_5(%arg0: i32) -> (i32, i32) {
    %c0_i32 = arith.constant 0 : i32
    %c0_i32_0 = arith.constant 0 : i32
    %c0_i32_1 = arith.constant 0 : i32
    return %c0_i32, %c0_i32_0 : i32, i32
  }
  func.func @transform_6(%arg0: i32) -> (i32, i32) {
    %c0_i32 = arith.constant 0 : i32
    %c0_i32_0 = arith.constant 0 : i32
    %c0_i32_1 = arith.constant 0 : i32
    return %c0_i32, %c0_i32_0 : i32, i32
  }
  func.func @transform_7(%arg0: i32) -> (i32, i32) {
    %c0_i32 = arith.constant 0 : i32
    %c0_i32_0 = arith.constant 0 : i32
    %c0_i32_1 = arith.constant 0 : i32
    return %c0_i32, %c0_i32_0 : i32, i32
  }
  func.func @transform_8(%arg0: i32) -> (i32, i32) {
    %c0_i32 = arith.constant 0 : i32
    %c0_i32_0 = arith.constant 0 : i32
    %c0_i32_1 = arith.constant 0 : i32
    return %c0_i32, %c0_i32_0 : i32, i32
  }
  func.func @transform_9(%arg0: i32) -> (i32, i32) {
    %c0_i32 = arith.constant 0 : i32
    %c0_i32_0 = arith.constant 0 : i32
    %c0_i32_1 = arith.constant 0 : i32
    return %c0_i32, %c0_i32_0 : i32, i32
  }
  func.func @transform_10(%arg0: i32) -> (i32, i32) {
    %c0_i32 = arith.constant 0 : i32
    %c0_i32_0 = arith.constant 0 : i32
    %c0_i32_1 = arith.constant 0 : i32
    return %c0_i32, %c0_i32_0 : i32, i32
  }
  func.func @transform_11(%arg0: i32) -> (i32, i32) {
    %c0_i32 = arith.constant 0 : i32
    %c0_i32_0 = arith.constant 0 : i32
    %c0_i32_1 = arith.constant 0 : i32
    return %c0_i32, %c0_i32_0 : i32, i32
  }
  func.func @transform_12(%arg0: i32) -> (i32, i32) {
    %c0_i32 = arith.constant 0 : i32
    %c0_i32_0 = arith.constant 0 : i32
    return %arg0, %c0_i32 : i32, i32
  }
}

</mosaic_0001>

<llo_original>
// kernel: tpu_custom_call.1
$region0: #{tpu_custom_call.1}
  #allocation0 [shape = 'u32[]', space=smem, size = 0x4, offset = 0x4, fixed_abs, tag = 'smem constant byte address 0x4 - core index']
  #allocation1 [shape = 'u32[144,128]{1,0:T(1,128)}', space=vmem, size = 0x12000, scoped, tag = 'internal scratch']
  %s0 = inlined_call_operand.vmem [shape: f32[16,32], index: 0, kind: input, shape index: {}]
  %s1 = inlined_call_operand.vmem [shape: f32[16,32], index: 1, kind: input, shape index: {}]
  %s2 = inlined_call_operand.vmem [shape: f32[16,32], index: 2, kind: input, shape index: {}]
  %s3 = inlined_call_operand.vmem [shape: f32[16,32], index: 3, kind: input, shape index: {}]
  %s4 = inlined_call_operand.vmem [shape: f32[32,64], index: 4, kind: input, shape index: {}]
  %s5 = inlined_call_operand.vmem [shape: f32[1,64], index: 5, kind: input, shape index: {}]
  %s6 = inlined_call_operand.vmem [shape: f32[64,32], index: 6, kind: input, shape index: {}]
  %s7 = inlined_call_operand.vmem [shape: f32[1,32], index: 7, kind: input, shape index: {}]
  %s8 = inlined_call_operand.vmem [shape: f32[32,64], index: 8, kind: input, shape index: {}]
  %s9 = inlined_call_operand.vmem [shape: f32[1,64], index: 9, kind: input, shape index: {}]
  %s10 = inlined_call_operand.vmem [shape: f32[64,32], index: 10, kind: input, shape index: {}]
  %s11 = inlined_call_operand.vmem [shape: f32[1,32], index: 11, kind: input, shape index: {}]
  %s12 = inlined_call_operand.hbm [shape: f32[16,32], index: 12, kind: output, shape index: {}]
  %s13 = sld [smem:[#allocation0]]
  $region81: #{tpu_custom_call.1} parent=0
    _
  %s15 = ssub.s32 1, %s13
  %s16 = scalar_select 0, %s15, %s13
  $region1: #{tpu_custom_call.1} parent=0
    #allocation2 [shape = 'u8[8192]{0}', space=vmem, size = 0x2000, scoped, tag = 'output window, operand 0']
    #allocation3 [shape = 's32[2]{0}', space=sflag, size = 0x8, scoped, tag = 'scoped memory for tpu_custom_call.1']
    %17 = vsyncpa [#allocation3], 0
    %s18 = scalar_lea.sflag [#allocation3], 1
    %19 = vsyncpa %s18, 0
    loop: start=0, step=1, limit=4
    $region2: #{tpu_custom_call.1} parent=1 // loop_pre_header
      _
    $region3: #{tpu_custom_call.1} parent=1 // loop_header
      %s21 = sphi 0, %s25
      %p22 = scmp.ge.s32.totalorder %s21, 4
      %s31 = sphi 0, %s33
      %s34 = sphi 0, %s31
      %s35 = sphi 0, %s34
      %s51 = sphi 0, %s35
      %s57 = sphi 0, %s59
      %s60 = sphi 0, %s57
      %s61 = sphi 0, %s60
      %s77 = sphi 0, %s61
      %s83 = sphi 0, %s85
      %s86 = sphi 0, %s83
      %s87 = sphi 0, %s86
      %s103 = sphi 0, %s87
      %s109 = sphi 0, %s111
      %s112 = sphi 0, %s109
      %s113 = sphi 0, %s112
      %s129 = sphi 0, %s113
      %s133 = sphi 0, %s133
      %s135 = sphi 0, %s133
      %s136 = sphi 0, %s135
      %s150 = sphi 0, %s136
      %s154 = sphi 0, %s154
      %s156 = sphi 0, %s154
      %s157 = sphi 0, %s156
      %s171 = sphi 0, %s157
      %s175 = sphi 0, %s175
      %s177 = sphi 0, %s175
      %s178 = sphi 0, %s177
      %s192 = sphi 0, %s178
      %s196 = sphi 0, %s196
      %s198 = sphi 0, %s196
      %s199 = sphi 0, %s198
      %s213 = sphi 0, %s199
      %s217 = sphi 0, %s217
      %s219 = sphi 0, %s217
      %s220 = sphi 0, %s219
      %s234 = sphi 0, %s220
      %s238 = sphi 0, %s238
      %s240 = sphi 0, %s238
      %s241 = sphi 0, %s240
      %s255 = sphi 0, %s241
      %s259 = sphi 0, %s259
      %s261 = sphi 0, %s259
      %s262 = sphi 0, %s261
      %s276 = sphi 0, %s262
      %s280 = sphi 0, %s280
      %s282 = sphi 0, %s280
      %s283 = sphi 0, %s282
      %s297 = sphi 0, %s283
      %s303 = sphi 0, %s305
      %s306 = sphi 0, %s303
      %s307 = sphi 0, %s306
      %s323 = sphi 0, %s307
    $region4: #{tpu_custom_call.1} parent=1 // loop_header_branch
      %24 = sbr.rel (%p22) target = $region8
    $region5: #{tpu_custom_call.1} parent=1 // loop_body
      %s26 = ssub.s32 %s21, 1
      %s27 = ssub.s32 %s21, 2
      %s28 = sadd.s32 %s21, 1
      %s29 = ssub.s32 %s21, %s28
      %p30 = scmp.eq.s32.totalorder %s29, 0
      %s32 = sadd.s32 %s31, 1
      %s33 = scalar_select %p30, %s31, %s32
      %p36 = pneg %p30
      %p37 = scmp.eq.s32.totalorder %s21, 1
      %p38 = por %p36, %p37
      %p39 = scmp.ne.s32.totalorder %s31, %s34
      %p40 = scmp.eq.s32.totalorder %s21, 0
      %p41 = por %p39, %p40
      %p42 = scmp.ne.s32.totalorder %s31, %s34
      %p43 = scmp.eq.s32.totalorder %s26, 1
      %p44 = por %p42, %p43
      %p45 = scmp.ne.s32.totalorder %s34, %s35
      %p46 = scmp.eq.s32.totalorder %s26, 0
      %p47 = por %p45, %p46
      %p48 = scmp.ne.s32.totalorder %s34, %s35
      %p49 = scmp.eq.s32.totalorder %s27, 1
      %p50 = por %p48, %p49
      %p52 = scmp.ne.s32.totalorder %s35, %s51
      %p53 = scmp.eq.s32.totalorder %s27, 0
      %p54 = por %p52, %p53
      %s55 = ssub.s32 %s21, %s28
      %p56 = scmp.eq.s32.totalorder %s55, 0
      %s58 = sadd.s32 %s57, 1
      %s59 = scalar_select %p56, %s57, %s58
      %p62 = pneg %p56
      %p63 = scmp.eq.s32.totalorder %s21, 1
      %p64 = por %p62, %p63
      %p65 = scmp.ne.s32.totalorder %s57, %s60
      %p66 = scmp.eq.s32.totalorder %s21, 0
      %p67 = por %p65, %p66
      %p68 = scmp.ne.s32.totalorder %s57, %s60
      %p69 = scmp.eq.s32.totalorder %s26, 1
      %p70 = por %p68, %p69
      %p71 = scmp.ne.s32.totalorder %s60, %s61
      %p72 = scmp.eq.s32.totalorder %s26, 0
      %p73 = por %p71, %p72
      %p74 = scmp.ne.s32.totalorder %s60, %s61
      %p75 = scmp.eq.s32.totalorder %s27, 1
      %p76 = por %p74, %p75
      %p78 = scmp.ne.s32.totalorder %s61, %s77
      %p79 = scmp.eq.s32.totalorder %s27, 0
      %p80 = por %p78, %p79
      %s81 = ssub.s32 %s21, %s28
      %p82 = scmp.eq.s32.totalorder %s81, 0
      %s84 = sadd.s32 %s83, 1
      %s85 = scalar_select %p82, %s83, %s84
      %p88 = pneg %p82
      %p89 = scmp.eq.s32.totalorder %s21, 1
      %p90 = por %p88, %p89
      %p91 = scmp.ne.s32.totalorder %s83, %s86
      %p92 = scmp.eq.s32.totalorder %s21, 0
      %p93 = por %p91, %p92
      %p94 = scmp.ne.s32.totalorder %s83, %s86
      %p95 = scmp.eq.s32.totalorder %s26, 1
      %p96 = por %p94, %p95
      %p97 = scmp.ne.s32.totalorder %s86, %s87
      %p98 = scmp.eq.s32.totalorder %s26, 0
      %p99 = por %p97, %p98
      %p100 = scmp.ne.s32.totalorder %s86, %s87
      %p101 = scmp.eq.s32.totalorder %s27, 1
      %p102 = por %p100, %p101
      %p104 = scmp.ne.s32.totalorder %s87, %s103
      %p105 = scmp.eq.s32.totalorder %s27, 0
      %p106 = por %p104, %p105
      %s107 = ssub.s32 %s21, %s28
      %p108 = scmp.eq.s32.totalorder %s107, 0
      %s110 = sadd.s32 %s109, 1
      %s111 = scalar_select %p108, %s109, %s110
      %p114 = pneg %p108
      %p115 = scmp.eq.s32.totalorder %s21, 1
      %p116 = por %p114, %p115
      %p117 = scmp.ne.s32.totalorder %s109, %s112
      %p118 = scmp.eq.s32.totalorder %s21, 0
      %p119 = por %p117, %p118
      %p120 = scmp.ne.s32.totalorder %s109, %s112
      %p121 = scmp.eq.s32.totalorder %s26, 1
      %p122 = por %p120, %p121
      %p123 = scmp.ne.s32.totalorder %s112, %s113
      %p124 = scmp.eq.s32.totalorder %s26, 0
      %p125 = por %p123, %p124
      %p126 = scmp.ne.s32.totalorder %s112, %s113
      %p127 = scmp.eq.s32.totalorder %s27, 1
      %p128 = por %p126, %p127
      %p130 = scmp.ne.s32.totalorder %s113, %s129
      %p131 = scmp.eq.s32.totalorder %s27, 0
      %p132 = por %p130, %p131
      %s134 = sadd.s32 %s133, 1
      %p137 = scmp.eq.s32.totalorder %s21, 1
      %p138 = scmp.ne.s32.totalorder %s133, %s135
      %p139 = scmp.eq.s32.totalorder %s21, 0
      %p140 = por %p138, %p139
      %p141 = scmp.ne.s32.totalorder %s133, %s135
      %p142 = scmp.eq.s32.totalorder %s26, 1
      %p143 = por %p141, %p142
      %p144 = scmp.ne.s32.totalorder %s135, %s136
      %p145 = scmp.eq.s32.totalorder %s26, 0
      %p146 = por %p144, %p145
      %p147 = scmp.ne.s32.totalorder %s135, %s136
      %p148 = scmp.eq.s32.totalorder %s27, 1
      %p149 = por %p147, %p148
      %p151 = scmp.ne.s32.totalorder %s136, %s150
      %p152 = scmp.eq.s32.totalorder %s27, 0
      %p153 = por %p151, %p152
      %s155 = sadd.s32 %s154, 1
      %p158 = scmp.eq.s32.totalorder %s21, 1
      %p159 = scmp.ne.s32.totalorder %s154, %s156
      %p160 = scmp.eq.s32.totalorder %s21, 0
      %p161 = por %p159, %p160
      %p162 = scmp.ne.s32.totalorder %s154, %s156
      %p163 = scmp.eq.s32.totalorder %s26, 1
      %p164 = por %p162, %p163
      %p165 = scmp.ne.s32.totalorder %s156, %s157
      %p166 = scmp.eq.s32.totalorder %s26, 0
      %p167 = por %p165, %p166
      %p168 = scmp.ne.s32.totalorder %s156, %s157
      %p169 = scmp.eq.s32.totalorder %s27, 1
      %p170 = por %p168, %p169
      %p172 = scmp.ne.s32.totalorder %s157, %s171
      %p173 = scmp.eq.s32.totalorder %s27, 0
      %p174 = por %p172, %p173
      %s176 = sadd.s32 %s175, 1
      %p179 = scmp.eq.s32.totalorder %s21, 1
      %p180 = scmp.ne.s32.totalorder %s175, %s177
      %p181 = scmp.eq.s32.totalorder %s21, 0
      %p182 = por %p180, %p181
      %p183 = scmp.ne.s32.totalorder %s175, %s177
      %p184 = scmp.eq.s32.totalorder %s26, 1
      %p185 = por %p183, %p184
      %p186 = scmp.ne.s32.totalorder %s177, %s178
      %p187 = scmp.eq.s32.totalorder %s26, 0
      %p188 = por %p186, %p187
      %p189 = scmp.ne.s32.totalorder %s177, %s178
      %p190 = scmp.eq.s32.totalorder %s27, 1
      %p191 = por %p189, %p190
      %p193 = scmp.ne.s32.totalorder %s178, %s192
      %p194 = scmp.eq.s32.totalorder %s27, 0
      %p195 = por %p193, %p194
      %s197 = sadd.s32 %s196, 1
      %p200 = scmp.eq.s32.totalorder %s21, 1
      %p201 = scmp.ne.s32.totalorder %s196, %s198
      %p202 = scmp.eq.s32.totalorder %s21, 0
      %p203 = por %p201, %p202
      %p204 = scmp.ne.s32.totalorder %s196, %s198
      %p205 = scmp.eq.s32.totalorder %s26, 1
      %p206 = por %p204, %p205
      %p207 = scmp.ne.s32.totalorder %s198, %s199
      %p208 = scmp.eq.s32.totalorder %s26, 0
      %p209 = por %p207, %p208
      %p210 = scmp.ne.s32.totalorder %s198, %s199
      %p211 = scmp.eq.s32.totalorder %s27, 1
      %p212 = por %p210, %p211
      %p214 = scmp.ne.s32.totalorder %s199, %s213
      %p215 = scmp.eq.s32.totalorder %s27, 0
      %p216 = por %p214, %p215
      %s218 = sadd.s32 %s217, 1
      %p221 = scmp.eq.s32.totalorder %s21, 1
      %p222 = scmp.ne.s32.totalorder %s217, %s219
      %p223 = scmp.eq.s32.totalorder %s21, 0
      %p224 = por %p222, %p223
      %p225 = scmp.ne.s32.totalorder %s217, %s219
      %p226 = scmp.eq.s32.totalorder %s26, 1
      %p227 = por %p225, %p226
      %p228 = scmp.ne.s32.totalorder %s219, %s220
      %p229 = scmp.eq.s32.totalorder %s26, 0
      %p230 = por %p228, %p229
      %p231 = scmp.ne.s32.totalorder %s219, %s220
      %p232 = scmp.eq.s32.totalorder %s27, 1
      %p233 = por %p231, %p232
      %p235 = scmp.ne.s32.totalorder %s220, %s234
      %p236 = scmp.eq.s32.totalorder %s27, 0
      %p237 = por %p235, %p236
      %s239 = sadd.s32 %s238, 1
      %p242 = scmp.eq.s32.totalorder %s21, 1
      %p243 = scmp.ne.s32.totalorder %s238, %s240
      %p244 = scmp.eq.s32.totalorder %s21, 0
      %p245 = por %p243, %p244
      %p246 = scmp.ne.s32.totalorder %s238, %s240
      %p247 = scmp.eq.s32.totalorder %s26, 1
      %p248 = por %p246, %p247
      %p249 = scmp.ne.s32.totalorder %s240, %s241
      %p250 = scmp.eq.s32.totalorder %s26, 0
      %p251 = por %p249, %p250
      %p252 = scmp.ne.s32.totalorder %s240, %s241
      %p253 = scmp.eq.s32.totalorder %s27, 1
      %p254 = por %p252, %p253
      %p256 = scmp.ne.s32.totalorder %s241, %s255
      %p257 = scmp.eq.s32.totalorder %s27, 0
      %p258 = por %p256, %p257
      %s260 = sadd.s32 %s259, 1
      %p263 = scmp.eq.s32.totalorder %s21, 1
      %p264 = scmp.ne.s32.totalorder %s259, %s261
      %p265 = scmp.eq.s32.totalorder %s21, 0
      %p266 = por %p264, %p265
      %p267 = scmp.ne.s32.totalorder %s259, %s261
      %p268 = scmp.eq.s32.totalorder %s26, 1
      %p269 = por %p267, %p268
      %p270 = scmp.ne.s32.totalorder %s261, %s262
      %p271 = scmp.eq.s32.totalorder %s26, 0
      %p272 = por %p270, %p271
      %p273 = scmp.ne.s32.totalorder %s261, %s262
      %p274 = scmp.eq.s32.totalorder %s27, 1
      %p275 = por %p273, %p274
      %p277 = scmp.ne.s32.totalorder %s262, %s276
      %p278 = scmp.eq.s32.totalorder %s27, 0
      %p279 = por %p277, %p278
      %s281 = sadd.s32 %s280, 1
      %p284 = scmp.eq.s32.totalorder %s21, 1
      %p285 = scmp.ne.s32.totalorder %s280, %s282
      %p286 = scmp.eq.s32.totalorder %s21, 0
      %p287 = por %p285, %p286
      %p288 = scmp.ne.s32.totalorder %s280, %s282
      %p289 = scmp.eq.s32.totalorder %s26, 1
      %p290 = por %p288, %p289
      %p291 = scmp.ne.s32.totalorder %s282, %s283
      %p292 = scmp.eq.s32.totalorder %s26, 0
      %p293 = por %p291, %p292
      %p294 = scmp.ne.s32.totalorder %s282, %s283
      %p295 = scmp.eq.s32.totalorder %s27, 1
      %p296 = por %p294, %p295
      %p298 = scmp.ne.s32.totalorder %s283, %s297
      %p299 = scmp.eq.s32.totalorder %s27, 0
      %p300 = por %p298, %p299
      %s301 = ssub.s32 %s21, %s28
      %p302 = scmp.eq.s32.totalorder %s301, 0
      %s304 = sadd.s32 %s303, 1
      %s305 = scalar_select %p302, %s303, %s304
      %p308 = pneg %p302
      %p309 = scmp.eq.s32.totalorder %s21, 1
      %p310 = por %p308, %p309
      %p311 = scmp.ne.s32.totalorder %s303, %s306
      %p312 = scmp.eq.s32.totalorder %s21, 0
      %p313 = por %p311, %p312
      %p314 = scmp.ne.s32.totalorder %s303, %s306
      %p315 = scmp.eq.s32.totalorder %s26, 1
      %p316 = por %p314, %p315
      %p317 = scmp.ne.s32.totalorder %s306, %s307
      %p318 = scmp.eq.s32.totalorder %s26, 0
      %p319 = por %p317, %p318
      %p320 = scmp.ne.s32.totalorder %s306, %s307
      %p321 = scmp.eq.s32.totalorder %s27, 1
      %p322 = por %p320, %p321
      %p324 = scmp.ne.s32.totalorder %s307, %s323
      %p325 = scmp.eq.s32.totalorder %s27, 0
      %p326 = por %p324, %p325
      %p327 = scmp.le.s32.totalorder 1, %s21
      %p328 = scmp.lt.s32.totalorder %s21, 3
      %p329 = pnand %p327, %p328
      %p330 = pneg %p329
      // Predicated region
      $region9: #{tpu_custom_call.1} parent=5 // pred_check
        _
      $region10: #{tpu_custom_call.1} parent=5 // pred_check_branch
        %332 = sbr.rel (%p329) target = $region12
      $region11: #{tpu_custom_call.1} parent=5 // pred_region
        %s333 = ssub.s32 %s21, 1
        // Predicated region
        $region13: #{tpu_custom_call.1} parent=11 // pred_check
          %p334 = pneg %p146
        $region14: #{tpu_custom_call.1} parent=11 // pred_check_branch
          %336 = sbr.rel (%p334) target = $region16
        $region15: #{tpu_custom_call.1} parent=11 // pred_region
          _
        $region16: #{tpu_custom_call.1} parent=11 // pred_fallthru
          _
        // Predicated region
        $region17: #{tpu_custom_call.1} parent=11 // pred_check
          %p337 = pneg %p167
        $region18: #{tpu_custom_call.1} parent=11 // pred_check_branch
          %339 = sbr.rel (%p337) target = $region20
        $region19: #{tpu_custom_call.1} parent=11 // pred_region
          _
        $region20: #{tpu_custom_call.1} parent=11 // pred_fallthru
          _
        // Predicated region
        $region21: #{tpu_custom_call.1} parent=11 // pred_check
          %p340 = pneg %p188
        $region22: #{tpu_custom_call.1} parent=11 // pred_check_branch
          %342 = sbr.rel (%p340) target = $region24
        $region23: #{tpu_custom_call.1} parent=11 // pred_region
          _
        $region24: #{tpu_custom_call.1} parent=11 // pred_fallthru
          _
        // Predicated region
        $region25: #{tpu_custom_call.1} parent=11 // pred_check
          %p343 = pneg %p209
        $region26: #{tpu_custom_call.1} parent=11 // pred_check_branch
          %345 = sbr.rel (%p343) target = $region28
        $region27: #{tpu_custom_call.1} parent=11 // pred_region
          _
        $region28: #{tpu_custom_call.1} parent=11 // pred_fallthru
          _
        // Predicated region
        $region29: #{tpu_custom_call.1} parent=11 // pred_check
          %p346 = pneg %p230
        $region30: #{tpu_custom_call.1} parent=11 // pred_check_branch
          %348 = sbr.rel (%p346) target = $region32
        $region31: #{tpu_custom_call.1} parent=11 // pred_region
          _
        $region32: #{tpu_custom_call.1} parent=11 // pred_fallthru
          _
        // Predicated region
        $region33: #{tpu_custom_call.1} parent=11 // pred_check
          %p349 = pneg %p251
        $region34: #{tpu_custom_call.1} parent=11 // pred_check_branch
          %351 = sbr.rel (%p349) target = $region36
        $region35: #{tpu_custom_call.1} parent=11 // pred_region
          _
        $region36: #{tpu_custom_call.1} parent=11 // pred_fallthru
          _
        // Predicated region
        $region37: #{tpu_custom_call.1} parent=11 // pred_check
          %p352 = pneg %p272
        $region38: #{tpu_custom_call.1} parent=11 // pred_check_branch
          %354 = sbr.rel (%p352) target = $region40
        $region39: #{tpu_custom_call.1} parent=11 // pred_region
          _
        $region40: #{tpu_custom_call.1} parent=11 // pred_fallthru
          _
        // Predicated region
        $region41: #{tpu_custom_call.1} parent=11 // pred_check
          %p355 = pneg %p293
        $region42: #{tpu_custom_call.1} parent=11 // pred_check_branch
          %357 = sbr.rel (%p355) target = $region44
        $region43: #{tpu_custom_call.1} parent=11 // pred_region
          _
        $region44: #{tpu_custom_call.1} parent=11 // pred_fallthru
          _
      $region12: #{tpu_custom_call.1} parent=5 // pred_fallthru
        _
      %p358 = scmp.lt.s32.totalorder %s21, 2
      // Predicated region
      $region45: #{tpu_custom_call.1} parent=5 // pred_check
        %p359 = pneg %p358
      $region46: #{tpu_custom_call.1} parent=5 // pred_check_branch
        %361 = sbr.rel (%p359) target = $region48
      $region47: #{tpu_custom_call.1} parent=5 // pred_region
        // Predicated region
        $region49: #{tpu_custom_call.1} parent=47 // pred_check
          %p362 = pneg %p41
        $region50: #{tpu_custom_call.1} parent=47 // pred_check_branch
          %364 = sbr.rel (%p362) target = $region52
        $region51: #{tpu_custom_call.1} parent=47 // pred_region
          %p365 = scmp.lt.s32.totalorder %s21, 1
          %s366 = scalar_select %p365, %s21, 1
          %s367 = smul.addr %s366, 8
          %s368 = scalar_lea.vmem %s0, %s367
        $region52: #{tpu_custom_call.1} parent=47 // pred_fallthru
          _
        // Predicated region
        $region53: #{tpu_custom_call.1} parent=47 // pred_check
          %p369 = pneg %p67
        $region54: #{tpu_custom_call.1} parent=47 // pred_check_branch
          %371 = sbr.rel (%p369) target = $region56
        $region55: #{tpu_custom_call.1} parent=47 // pred_region
          %p372 = scmp.lt.s32.totalorder %s21, 1
          %s373 = scalar_select %p372, %s21, 1
          %s374 = smul.addr %s373, 8
          %s375 = scalar_lea.vmem %s1, %s374
        $region56: #{tpu_custom_call.1} parent=47 // pred_fallthru
          _
        // Predicated region
        $region57: #{tpu_custom_call.1} parent=47 // pred_check
          %p376 = pneg %p93
        $region58: #{tpu_custom_call.1} parent=47 // pred_check_branch
          %378 = sbr.rel (%p376) target = $region60
        $region59: #{tpu_custom_call.1} parent=47 // pred_region
          %p379 = scmp.lt.s32.totalorder %s21, 1
          %s380 = scalar_select %p379, %s21, 1
          %s381 = smul.addr %s380, 8
          %s382 = scalar_lea.vmem %s2, %s381
        $region60: #{tpu_custom_call.1} parent=47 // pred_fallthru
          _
        // Predicated region
        $region61: #{tpu_custom_call.1} parent=47 // pred_check
          %p383 = pneg %p119
        $region62: #{tpu_custom_call.1} parent=47 // pred_check_branch
          %385 = sbr.rel (%p383) target = $region64
        $region63: #{tpu_custom_call.1} parent=47 // pred_region
          %p386 = scmp.lt.s32.totalorder %s21, 1
          %s387 = scalar_select %p386, %s21, 1
          %s388 = smul.addr %s387, 8
          %s389 = scalar_lea.vmem %s3, %s388
        $region64: #{tpu_custom_call.1} parent=47 // pred_fallthru
          _
      $region48: #{tpu_custom_call.1} parent=5 // pred_fallthru
        _
      %p390 = scmp.le.s32.totalorder 1, %s21
      %p391 = scmp.lt.s32.totalorder %s21, 3
      %p392 = pnand %p390, %p391
      %p393 = pneg %p392
      // Predicated region
      $region65: #{tpu_custom_call.1} parent=5 // pred_check
        _
      $region66: #{tpu_custom_call.1} parent=5 // pred_check_branch
        %395 = sbr.rel (%p392) target = $region68
      $region67: #{tpu_custom_call.1} parent=5 // pred_region
        %s396 = ssub.s32 %s21, 1
        %p397 = scmp.lt.s32.totalorder %s26, 1
        %s398 = scalar_select %p397, %s26, 1
        %s399 = smul.addr %s398, 8
        %s400 = scalar_lea.vmem %s0, %s399
        %p401 = pneg %p47
        %p402 = pneg %p44
        %p403 = scmp.lt.s32.totalorder %s26, 1
        %s404 = scalar_select %p403, %s26, 1
        %s405 = smul.addr %s404, 8
        %s406 = scalar_lea.vmem %s1, %s405
        %p407 = pneg %p73
        %p408 = pneg %p70
        %p409 = scmp.lt.s32.totalorder %s26, 1
        %s410 = scalar_select %p409, %s26, 1
        %s411 = smul.addr %s410, 8
        %s412 = scalar_lea.vmem %s2, %s411
        %p413 = pneg %p99
        %p414 = pneg %p96
        %p415 = scmp.lt.s32.totalorder %s26, 1
        %s416 = scalar_select %p415, %s26, 1
        %s417 = smul.addr %s416, 8
        %s418 = scalar_lea.vmem %s3, %s417
        %p419 = pneg %p125
        %p420 = pneg %p122
        %p421 = pneg %p146
        %p422 = pneg %p143
        %p423 = pneg %p167
        %p424 = pneg %p164
        %p425 = pneg %p188
        %p426 = pneg %p185
        %p427 = pneg %p209
        %p428 = pneg %p206
        %p429 = pneg %p230
        %p430 = pneg %p227
        %p431 = pneg %p251
        %p432 = pneg %p248
        %p433 = pneg %p272
        %p434 = pneg %p269
        %p435 = pneg %p293
        %p436 = pneg %p290
        %p437 = pneg %p319
        %p438 = pneg %p316
        %s439 = sand.u32 %s306, 1
        %s440 = scalar_lea.sflag [#allocation3], %s439
        %s441 = sand.u32 %s306, 1
        %s442 = smul.addr %s441, 8
        %s443 = scalar_lea.vmem [#allocation2], %s442
        %p444 = scmp.lt.s32.totalorder %s26, 1
        %s445 = scalar_select %p444, %s26, 1
        %s446 = smul.addr %s445, 8
        %s447 = scalar_lea.vmem %s0, %s446
        %p448 = scmp.lt.s32.totalorder %s26, 1
        %s449 = scalar_select %p448, %s26, 1
        %s450 = smul.addr %s449, 8
        %s451 = scalar_lea.vmem %s1, %s450
        %p452 = scmp.lt.s32.totalorder %s26, 1
        %s453 = scalar_select %p452, %s26, 1
        %s454 = smul.addr %s453, 8
        %s455 = scalar_lea.vmem %s2, %s454
        %p456 = scmp.lt.s32.totalorder %s26, 1
        %s457 = scalar_select %p456, %s26, 1
        %s458 = smul.addr %s457, 8
        %s459 = scalar_lea.vmem %s3, %s458
        %v460 = vld [vmem:[%s447] sm:$0xff]
        %v461 = vld [vmem:[%s451] sm:$0xff]
        %v462 = vld [vmem:[%s4] sm:$0xff]
        %v463 = vld [vmem:[%s4 + $0x8] sm:$0xff]
        %v464 = vld [vmem:[%s4 + $0x10] sm:$0xff]
        %v465 = vld [vmem:[%s4 + $0x18] sm:$0xff]
        %v466 = vld [vmem:[%s5] sm:$0x1]
        %v468 = vlaneseq
        %v469 = vshrl.u32 %v468, 7
        %v470 = vsub.s32 0, %v469
        %v471 = vrot.slane %v466, %v470
        %vm473 = vcmask 261120
        %v475 = vsel %vm473, %v460, 0
        %477 = vmatprep.subr.mxu0 0.0
        %478 = vmatpush1.msra.mxu0 0.0
        %479 = vmatprep.subr.mxu0 0.0
        %480 = vmatpush1.msra.mxu0 0.0
        %481 = vmatprep.subr.mxu0 0.0
        %482 = vmatpush1.msra.mxu0 0.0
        %483 = vmatprep.subr.mxu0 0.0
        %484 = vmatpush1.msra.mxu0 0.0
        %485 = vmatprep.subr.mxu0 0.0
        %486 = vmatpush1.msra.mxu0 0.0
        %487 = vmatprep.subr.mxu0 0.0
        %488 = vmatpush1.msra.mxu0 0.0
        %489 = vmatprep.subr.mxu0 0.0
        %490 = vmatpush1.msra.mxu0 0.0
        %491 = vmatprep.subr.mxu0 0.0
        %492 = vmatpush1.msra.mxu0 0.0
        %493 = vmatprep.subr.mxu0 0.0
        %494 = vmatpush1.msra.mxu0 0.0
        %495 = vmatprep.subr.mxu0 0.0
        %496 = vmatpush1.msra.mxu0 0.0
        %497 = vmatprep.subr.mxu0 0.0
        %498 = vmatpush1.msra.mxu0 0.0
        %499 = vmatprep.subr.mxu0 0.0
        %500 = vmatpush1.msra.mxu0 0.0
        %501 = vmatprep.subr.mxu0 0.0
        %502 = vmatpush1.msra.mxu0 %v465
        %503 = vmatprep.subr.mxu0 0.0
        %504 = vmatpush1.msra.mxu0 %v464
        %505 = vmatprep.subr.mxu0 0.0
        %506 = vmatpush1.msra.mxu0 %v463
        %507 = vmatprep.subr.mxu0 0.0
        %508 = vmatpush1.msra.mxu0 %v462
        %509 = vmatprep.subr.mxu0 0.0
        %510 = vmatpush2.msra.mxu0 0.0
        %511 = vmatprep.subr.mxu0 0.0
        %512 = vmatpush2.msra.mxu0 0.0
        %513 = vmatprep.subr.mxu0 0.0
        %514 = vmatpush2.msra.mxu0 0.0
        %515 = vmatprep.subr.mxu0 0.0
        %516 = vmatpush2.msra.mxu0 0.0
        %517 = vmatprep.subr.mxu0 0.0
        %518 = vmatpush2.msra.mxu0 0.0
        %519 = vmatprep.subr.mxu0 0.0
        %520 = vmatpush2.msra.mxu0 0.0
        %521 = vmatprep.subr.mxu0 0.0
        %522 = vmatpush2.msra.mxu0 0.0
        %523 = vmatprep.subr.mxu0 0.0
        %524 = vmatpush2.msra.mxu0 0.0
        %525 = vmatprep.subr.mxu0 0.0
        %526 = vmatpush2.msra.mxu0 0.0
        %527 = vmatprep.subr.mxu0 0.0
        %528 = vmatpush2.msra.mxu0 0.0
        %529 = vmatprep.subr.mxu0 0.0
        %530 = vmatpush2.msra.mxu0 0.0
        %531 = vmatprep.subr.mxu0 0.0
        %532 = vmatpush2.msra.mxu0 0.0
        %533 = vmatprep.subr.mxu0 0.0
        %534 = vmatpush2.msra.mxu0 0.0
        %535 = vmatprep.subr.mxu0 0.0
        %536 = vmatpush2.msra.mxu0 0.0
        %537 = vmatprep.subr.mxu0 0.0
        %538 = vmatpush2.msra.mxu0 0.0
        %539 = vmatprep.subr.mxu0 0.0
        %540 = vmatpush2.msra.mxu0 0.0
        %541 = vmatprep.mubr.f32.mxu0 0.0
        %542 = vmatmul.mubr.f32.gmra.mxu0 %v475
        %v543 = vpop.f32.mrf.mxu0
        %v544 = vadd.f32 %v471, %v543
        %v545 = vpop.f32.mrf.mxu0
        %546 = vdwg.mxu0
        %v547 = vmax.f32 %v544, 0.0
        %v548 = vld [vmem:[%s6] sm:$0xff]
        %v549 = vld [vmem:[%s6 + $0x8] sm:$0xff]
        %v550 = vld [vmem:[%s6 + $0x10] sm:$0xff]
        %v551 = vld [vmem:[%s6 + $0x18] sm:$0xff]
        %v552 = vld [vmem:[%s6 + $0x20] sm:$0xff]
        %v553 = vld [vmem:[%s6 + $0x28] sm:$0xff]
        %v554 = vld [vmem:[%s6 + $0x30] sm:$0xff]
        %v555 = vld [vmem:[%s6 + $0x38] sm:$0xff]
        %v556 = vld [vmem:[%s7] sm:$0x1]
        %v558 = vlaneseq
        %v559 = vshrl.u32 %v558, 7
        %v560 = vsub.s32 0, %v559
        %v561 = vrot.slane %v556, %v560
        %vm563 = vcmask 523264
        %v565 = vsel %vm563, %v547, 0
        %567 = vmatprep.subr.mxu0 0.0
        %568 = vmatpush1.msra.mxu0 0.0
        %569 = vmatprep.subr.mxu0 0.0
        %570 = vmatpush1.msra.mxu0 0.0
        %571 = vmatprep.subr.mxu0 0.0
        %572 = vmatpush1.msra.mxu0 0.0
        %573 = vmatprep.subr.mxu0 0.0
        %574 = vmatpush1.msra.mxu0 0.0
        %575 = vmatprep.subr.mxu0 0.0
        %576 = vmatpush1.msra.mxu0 0.0
        %577 = vmatprep.subr.mxu0 0.0
        %578 = vmatpush1.msra.mxu0 0.0
        %579 = vmatprep.subr.mxu0 0.0
        %580 = vmatpush1.msra.mxu0 0.0
        %581 = vmatprep.subr.mxu0 0.0
        %582 = vmatpush1.msra.mxu0 0.0
        %583 = vmatprep.subr.mxu0 0.0
        %584 = vmatpush1.msra.mxu0 %v555
        %585 = vmatprep.subr.mxu0 0.0
        %586 = vmatpush1.msra.mxu0 %v554
        %587 = vmatprep.subr.mxu0 0.0
        %588 = vmatpush1.msra.mxu0 %v553
        %589 = vmatprep.subr.mxu0 0.0
        %590 = vmatpush1.msra.mxu0 %v552
        %591 = vmatprep.subr.mxu0 0.0
        %592 = vmatpush1.msra.mxu0 %v551
        %593 = vmatprep.subr.mxu0 0.0
        %594 = vmatpush1.msra.mxu0 %v550
        %595 = vmatprep.subr.mxu0 0.0
        %596 = vmatpush1.msra.mxu0 %v549
        %597 = vmatprep.subr.mxu0 0.0
        %598 = vmatpush1.msra.mxu0 %v548
        %599 = vmatprep.subr.mxu0 0.0
        %600 = vmatpush2.msra.mxu0 0.0
        %601 = vmatprep.subr.mxu0 0.0
        %602 = vmatpush2.msra.mxu0 0.0
        %603 = vmatprep.subr.mxu0 0.0
        %604 = vmatpush2.msra.mxu0 0.0
        %605 = vmatprep.subr.mxu0 0.0
        %606 = vmatpush2.msra.mxu0 0.0
        %607 = vmatprep.subr.mxu0 0.0
        %608 = vmatpush2.msra.mxu0 0.0
        %609 = vmatprep.subr.mxu0 0.0
        %610 = vmatpush2.msra.mxu0 0.0
        %611 = vmatprep.subr.mxu0 0.0
        %612 = vmatpush2.msra.mxu0 0.0
        %613 = vmatprep.subr.mxu0 0.0
        %614 = vmatpush2.msra.mxu0 0.0
        %615 = vmatprep.subr.mxu0 0.0
        %616 = vmatpush2.msra.mxu0 0.0
        %617 = vmatprep.subr.mxu0 0.0
        %618 = vmatpush2.msra.mxu0 0.0
        %619 = vmatprep.subr.mxu0 0.0
        %620 = vmatpush2.msra.mxu0 0.0
        %621 = vmatprep.subr.mxu0 0.0
        %622 = vmatpush2.msra.mxu0 0.0
        %623 = vmatprep.subr.mxu0 0.0
        %624 = vmatpush2.msra.mxu0 0.0
        %625 = vmatprep.subr.mxu0 0.0
        %626 = vmatpush2.msra.mxu0 0.0
        %627 = vmatprep.subr.mxu0 0.0
        %628 = vmatpush2.msra.mxu0 0.0
        %629 = vmatprep.subr.mxu0 0.0
        %630 = vmatpush2.msra.mxu0 0.0
        %631 = vmatprep.mubr.f32.mxu0 0.0
        %632 = vmatmul.mubr.f32.gmra.mxu0 %v565
        %v633 = vpop.f32.mrf.mxu0
        %v634 = vadd.f32 %v561, %v633
        %v635 = vpop.f32.mrf.mxu0
        %636 = vdwg.mxu0
        %v637 = vld [vmem:[%s8] sm:$0xff]
        %v638 = vld [vmem:[%s8 + $0x8] sm:$0xff]
        %v639 = vld [vmem:[%s8 + $0x10] sm:$0xff]
        %v640 = vld [vmem:[%s8 + $0x18] sm:$0xff]
        %v641 = vld [vmem:[%s9] sm:$0x1]
        %v643 = vlaneseq
        %v644 = vshrl.u32 %v643, 7
        %v645 = vsub.s32 0, %v644
        %v646 = vrot.slane %v641, %v645
        %v649 = vsel %vm473, %v461, 0
        %651 = vmatprep.subr.mxu0 0.0
        %652 = vmatpush1.msra.mxu0 0.0
        %653 = vmatprep.subr.mxu0 0.0
        %654 = vmatpush1.msra.mxu0 0.0
        %655 = vmatprep.subr.mxu0 0.0
        %656 = vmatpush1.msra.mxu0 0.0
        %657 = vmatprep.subr.mxu0 0.0
        %658 = vmatpush1.msra.mxu0 0.0
        %659 = vmatprep.subr.mxu0 0.0
        %660 = vmatpush1.msra.mxu0 0.0
        %661 = vmatprep.subr.mxu0 0.0
        %662 = vmatpush1.msra.mxu0 0.0
        %663 = vmatprep.subr.mxu0 0.0
        %664 = vmatpush1.msra.mxu0 0.0
        %665 = vmatprep.subr.mxu0 0.0
        %666 = vmatpush1.msra.mxu0 0.0
        %667 = vmatprep.subr.mxu0 0.0
        %668 = vmatpush1.msra.mxu0 0.0
        %669 = vmatprep.subr.mxu0 0.0
        %670 = vmatpush1.msra.mxu0 0.0
        %671 = vmatprep.subr.mxu0 0.0
        %672 = vmatpush1.msra.mxu0 0.0
        %673 = vmatprep.subr.mxu0 0.0
        %674 = vmatpush1.msra.mxu0 0.0
        %675 = vmatprep.subr.mxu0 0.0
        %676 = vmatpush1.msra.mxu0 %v640
        %677 = vmatprep.subr.mxu0 0.0
        %678 = vmatpush1.msra.mxu0 %v639
        %679 = vmatprep.subr.mxu0 0.0
        %680 = vmatpush1.msra.mxu0 %v638
        %681 = vmatprep.subr.mxu0 0.0
        %682 = vmatpush1.msra.mxu0 %v637
        %683 = vmatprep.subr.mxu0 0.0
        %684 = vmatpush2.msra.mxu0 0.0
        %685 = vmatprep.subr.mxu0 0.0
        %686 = vmatpush2.msra.mxu0 0.0
        %687 = vmatprep.subr.mxu0 0.0
        %688 = vmatpush2.msra.mxu0 0.0
        %689 = vmatprep.subr.mxu0 0.0
        %690 = vmatpush2.msra.mxu0 0.0
        %691 = vmatprep.subr.mxu0 0.0
        %692 = vmatpush2.msra.mxu0 0.0
        %693 = vmatprep.subr.mxu0 0.0
        %694 = vmatpush2.msra.mxu0 0.0
        %695 = vmatprep.subr.mxu0 0.0
        %696 = vmatpush2.msra.mxu0 0.0
        %697 = vmatprep.subr.mxu0 0.0
        %698 = vmatpush2.msra.mxu0 0.0
        %699 = vmatprep.subr.mxu0 0.0
        %700 = vmatpush2.msra.mxu0 0.0
        %701 = vmatprep.subr.mxu0 0.0
        %702 = vmatpush2.msra.mxu0 0.0
        %703 = vmatprep.subr.mxu0 0.0
        %704 = vmatpush2.msra.mxu0 0.0
        %705 = vmatprep.subr.mxu0 0.0
        %706 = vmatpush2.msra.mxu0 0.0
        %707 = vmatprep.subr.mxu0 0.0
        %708 = vmatpush2.msra.mxu0 0.0
        %709 = vmatprep.subr.mxu0 0.0
        %710 = vmatpush2.msra.mxu0 0.0
        %711 = vmatprep.subr.mxu0 0.0
        %712 = vmatpush2.msra.mxu0 0.0
        %713 = vmatprep.subr.mxu0 0.0
        %714 = vmatpush2.msra.mxu0 0.0
        %715 = vmatprep.mubr.f32.mxu0 0.0
        %716 = vmatmul.mubr.f32.gmra.mxu0 %v649
        %v717 = vpop.f32.mrf.mxu0
        %v718 = vadd.f32 %v646, %v717
        %v719 = vpop.f32.mrf.mxu0
        %720 = vdwg.mxu0
        %v721 = vmax.f32 %v718, 0.0
        %v722 = vld [vmem:[%s10] sm:$0xff]
        %v723 = vld [vmem:[%s10 + $0x8] sm:$0xff]
        %v724 = vld [vmem:[%s10 + $0x10] sm:$0xff]
        %v725 = vld [vmem:[%s10 + $0x18] sm:$0xff]
        %v726 = vld [vmem:[%s10 + $0x20] sm:$0xff]
        %v727 = vld [vmem:[%s10 + $0x28] sm:$0xff]
        %v728 = vld [vmem:[%s10 + $0x30] sm:$0xff]
        %v729 = vld [vmem:[%s10 + $0x38] sm:$0xff]
        %v730 = vld [vmem:[%s11] sm:$0x1]
        %v732 = vlaneseq
        %v733 = vshrl.u32 %v732, 7
        %v734 = vsub.s32 0, %v733
        %v735 = vrot.slane %v730, %v734
        %v738 = vsel %vm563, %v721, 0
        %740 = vmatprep.subr.mxu0 0.0
        %741 = vmatpush1.msra.mxu0 0.0
        %742 = vmatprep.subr.mxu0 0.0
        %743 = vmatpush1.msra.mxu0 0.0
        %744 = vmatprep.subr.mxu0 0.0
        %745 = vmatpush1.msra.mxu0 0.0
        %746 = vmatprep.subr.mxu0 0.0
        %747 = vmatpush1.msra.mxu0 0.0
        %748 = vmatprep.subr.mxu0 0.0
        %749 = vmatpush1.msra.mxu0 0.0
        %750 = vmatprep.subr.mxu0 0.0
        %751 = vmatpush1.msra.mxu0 0.0
        %752 = vmatprep.subr.mxu0 0.0
        %753 = vmatpush1.msra.mxu0 0.0
        %754 = vmatprep.subr.mxu0 0.0
        %755 = vmatpush1.msra.mxu0 0.0
        %756 = vmatprep.subr.mxu0 0.0
        %757 = vmatpush1.msra.mxu0 %v729
        %758 = vmatprep.subr.mxu0 0.0
        %759 = vmatpush1.msra.mxu0 %v728
        %760 = vmatprep.subr.mxu0 0.0
        %761 = vmatpush1.msra.mxu0 %v727
        %762 = vmatprep.subr.mxu0 0.0
        %763 = vmatpush1.msra.mxu0 %v726
        %764 = vmatprep.subr.mxu0 0.0
        %765 = vmatpush1.msra.mxu0 %v725
        %766 = vmatprep.subr.mxu0 0.0
        %767 = vmatpush1.msra.mxu0 %v724
        %768 = vmatprep.subr.mxu0 0.0
        %769 = vmatpush1.msra.mxu0 %v723
        %770 = vmatprep.subr.mxu0 0.0
        %771 = vmatpush1.msra.mxu0 %v722
        %772 = vmatprep.subr.mxu0 0.0
        %773 = vmatpush2.msra.mxu0 0.0
        %774 = vmatprep.subr.mxu0 0.0
        %775 = vmatpush2.msra.mxu0 0.0
        %776 = vmatprep.subr.mxu0 0.0
        %777 = vmatpush2.msra.mxu0 0.0
        %778 = vmatprep.subr.mxu0 0.0
        %779 = vmatpush2.msra.mxu0 0.0
        %780 = vmatprep.subr.mxu0 0.0
        %781 = vmatpush2.msra.mxu0 0.0
        %782 = vmatprep.subr.mxu0 0.0
        %783 = vmatpush2.msra.mxu0 0.0
        %784 = vmatprep.subr.mxu0 0.0
        %785 = vmatpush2.msra.mxu0 0.0
        %786 = vmatprep.subr.mxu0 0.0
        %787 = vmatpush2.msra.mxu0 0.0
        %788 = vmatprep.subr.mxu0 0.0
        %789 = vmatpush2.msra.mxu0 0.0
        %790 = vmatprep.subr.mxu0 0.0
        %791 = vmatpush2.msra.mxu0 0.0
        %792 = vmatprep.subr.mxu0 0.0
        %793 = vmatpush2.msra.mxu0 0.0
        %794 = vmatprep.subr.mxu0 0.0
        %795 = vmatpush2.msra.mxu0 0.0
        %796 = vmatprep.subr.mxu0 0.0
        %797 = vmatpush2.msra.mxu0 0.0
        %798 = vmatprep.subr.mxu0 0.0
        %799 = vmatpush2.msra.mxu0 0.0
        %800 = vmatprep.subr.mxu0 0.0
        %801 = vmatpush2.msra.mxu0 0.0
        %802 = vmatprep.subr.mxu0 0.0
        %803 = vmatpush2.msra.mxu0 0.0
        %804 = vmatprep.mubr.f32.mxu0 0.0
        %805 = vmatmul.mubr.f32.gmra.mxu0 %v738
        %v806 = vpop.f32.mrf.mxu0
        %v807 = vadd.f32 %v735, %v806
        %v808 = vpop.f32.mrf.mxu0
        %809 = vdwg.mxu0
        %v810 = vld [vmem:[%s455] sm:$0xff]
        %v811 = vadd.f32 %v634, %v810
        %v812 = vld [vmem:[%s459] sm:$0xff]
        %v813 = vadd.f32 %v807, %v812
        %vm814 = vcmp.ge.f32.partialorder %v811, %v813
        %v815 = vsel %vm814, %v460, %v461
        %816 = vst.msk [vmem:[%s443] sm:$0xff] %vm473, %v815
        %s817 = sand.u32 %s306, 1
        %s818 = scalar_lea.sflag [#allocation3], %s817
        %s819 = sand.u32 %s306, 1
        %s820 = smul.addr %s819, 8
        %s821 = scalar_lea.vmem [#allocation2], %s820
        // Predicated region
        $region69: #{tpu_custom_call.1} parent=67 // pred_check
          %p822 = pneg %p316
        $region70: #{tpu_custom_call.1} parent=67 // pred_check_branch
          %824 = sbr.rel (%p822) target = $region72
        $region71: #{tpu_custom_call.1} parent=67 // pred_region
          %s826 = ssub.s32 128, 128
          %827 = vsyncadd %s818, %s826
          %s828 = smul.addr %s26, 128
          %s829 = scalar_lea.hbm %s12, %s828
          %s831 = sshll.u32 %s821, 4
          %s832 = int_to_ptr.vmem [resolvable:$true] %s831
          %834 = dma.vmem_to_hbm [thread:$0]  %s832, 128, %s829, %s818
        $region72: #{tpu_custom_call.1} parent=67 // pred_fallthru
          _
      $region68: #{tpu_custom_call.1} parent=5 // pred_fallthru
        _
      %p835 = scmp.le.s32.totalorder 2, %s21
      // Predicated region
      $region73: #{tpu_custom_call.1} parent=5 // pred_check
        %p836 = pneg %p835
      $region74: #{tpu_custom_call.1} parent=5 // pred_check_branch
        %838 = sbr.rel (%p836) target = $region76
      $region75: #{tpu_custom_call.1} parent=5 // pred_region
        %s839 = ssub.s32 %s21, 2
        // Predicated region
        $region77: #{tpu_custom_call.1} parent=75 // pred_check
          %p840 = pneg %p322
        $region78: #{tpu_custom_call.1} parent=75 // pred_check_branch
          %842 = sbr.rel (%p840) target = $region80
        $region79: #{tpu_custom_call.1} parent=75 // pred_region
          %s843 = sand.u32 %s307, 1
          %s844 = scalar_lea.sflag [#allocation3], %s843
          %s845 = sand.u32 %s307, 1
          %s846 = smul.addr %s845, 8
          %s847 = scalar_lea.vmem [#allocation2], %s846
          %848 = dma.done %s844, 128
        $region80: #{tpu_custom_call.1} parent=75 // pred_fallthru
          _
      $region76: #{tpu_custom_call.1} parent=5 // pred_fallthru
        _
    $region6: #{tpu_custom_call.1} parent=1 // loop_footer
      %s25 = sadd.s32 1, %s21
    $region7: #{tpu_custom_call.1} parent=1 // loop_footer_branch
      %20 = sbr.rel target = $region3
    $region8: #{tpu_custom_call.1} parent=1 // loop_exit
      _
    %849 = vsyncpa [#allocation3], 1
    %s850 = scalar_lea.sflag [#allocation3], 1
    %851 = vsyncpa %s850, 1

</llo_original>
